<compile_context>
chip_gen: v6e
topology: v6e:2x2x1
jax: 0.10.0
libtpu: 0.0.40
codegen_flags: <defaults>
</compile_context>

<pallas_src>
import functools

import jax
import jax.numpy as jnp
from jax import lax
from jax.experimental import pallas as pl
from jax.experimental.pallas import tpu as pltpu


def _vmem_budget_and_limit():
    """Generation-aware VMEM budget (v7x: 64 MiB/TC; v5e/v6e: 128 MiB)."""
    try:
        cap = int(pltpu.get_tpu_info().vmem_capacity_bytes)
    except Exception:
        cap = 64 * 1024 * 1024  # conservative default = v7x per-TC VMEM
    budget = min(cap // 2, 48 * 1024 * 1024)
    limit = max(16 * 1024 * 1024,
                min(cap - (8 * 1024 * 1024), budget + (16 * 1024 * 1024)))
    return budget, limit


def _pick_block_rows(total_rows, row_cap, align=16):
    """Largest `align`-aligned divisor of total_rows <= row_cap (else total_rows)."""
    row_cap = min(total_rows, max(align, int(row_cap)))
    if row_cap >= total_rows:
        return total_rows
    t = (row_cap // align) * align
    while t >= align:
        if total_rows % t == 0:
            return t
        t -= align
    return total_rows  # no aligned divisor under the cap -> run as a single block


def fused_conv_bn_relu_kernel(x_ref, w_ref, m_ref, gamma_ref, beta_ref,
                              out_ref, psum_ref, psq_ref,
                              *, rows_per_step, inv_count, eps):
    """One grid step of the fused Conv(3,3,1) + train-mode BN + ReLU.

    x_ref:     (TR, 3*H*Cin)     bf16  pre-concatenated kd row-bands (lane-dense K)
    w_ref:     (3*H*Cin, H*Cout) bf16  block-Toeplitz conv weight (kh taps folded in)
    m_ref:     (H*Cout, H*Cout)  f32   0/1 channel-gather matrix (lane -> channel sum)
    gamma_ref: (1, H*Cout)       f32   BN gamma tiled per lane
    beta_ref:  (1, H*Cout)       f32   BN beta tiled per lane
    out_ref:   (B*D, H*Cout)     f32   VMEM-resident activation (accumulator pattern)
    psum_ref/psq_ref: (1, H*Cout) f32  running sums over rows (scratch, never to HBM)
    """
    i = pl.program_id(0)

    @pl.when(i == 0)
    def _():
        psum_ref[...] = jnp.zeros_like(psum_ref)
        psq_ref[...] = jnp.zeros_like(psq_ref)

    # Single K ~= 3*H*Cin matmul per step; bf16 operands, f32 accumulation.
    acc = jnp.dot(x_ref[...], w_ref[...], preferred_element_type=jnp.float32)

    # Running per-lane statistics (sublane-only reduction), kept in f32 scratch.
    psum_ref[...] += jnp.sum(acc, axis=0, keepdims=True)
    psq_ref[...] += jnp.sum(acc * acc, axis=0, keepdims=True)

    r0 = pl.multiple_of(i * rows_per_step, rows_per_step)
    out_ref[pl.ds(r0, rows_per_step), :] = acc

    # Final step: fold stats per channel, build scale/shift, BN+ReLU in place.
    @pl.when(i == pl.num_programs(0) - 1)
    def _():
        csum = jnp.dot(psum_ref[...], m_ref[...], preferred_element_type=jnp.float32)
        csq = jnp.dot(psq_ref[...], m_ref[...], preferred_element_type=jnp.float32)
        mean = csum * inv_count
        # Clamp: single-pass E[y^2] - mean^2 can go slightly negative.
        var = jnp.maximum(csq * inv_count - mean * mean, 0.0)
        scale = gamma_ref[...] * lax.rsqrt(var + eps)
        shift = beta_ref[...] - mean * scale
        out_ref[...] = jnp.maximum(out_ref[...] * scale + shift, 0.0)


def prepare_conv_block_params(weight, bias, gamma, beta, H):
    """Per-weight-update preprocessing.  Cache the result; do NOT rebuild per forward.

    weight: (Cout, Cin, 3, 3, 1); bias: (Cout,) -- dropped (cancels exactly under
    train-mode BN with batch statistics); gamma/beta: (Cout,); H: spatial height.
    """
    del bias
    Cout, Cin = weight.shape[0], weight.shape[1]
    K = H * Cin
    HCout = H * Cout
    # (Cout, Cin, kd, kh) -> (kd, kh, Cin, Cout)
    w4 = jnp.transpose(weight[..., 0], (2, 3, 1, 0)).astype(jnp.float32)
    # sel[j, h_in, h] = 1 iff h_in == h + j - 1 (kh tap pattern; H halo folded here,
    # out-of-range taps simply absent -> no H padding of x needed).
    sel = jnp.stack([jnp.eye(H, H, k=1 - j, dtype=jnp.float32) for j in range(3)], axis=0)
    w2 = jnp.einsum("jph,djio->dpiho", sel, w4)                # (kd, h_in, Cin, h, Cout)
    w2cat = w2.reshape(3 * K, HCout).astype(jnp.bfloat16)      # K-concatenated Toeplitz
    # 0/1 channel-gather: lane (h, c) <- sum over lanes (h', c) of the same channel.
    m_mat = jnp.tile(jnp.eye(Cout, dtype=jnp.float32), (H, H))
    gamma_lane = jnp.tile(gamma.astype(jnp.float32), H).reshape(1, HCout)
    beta_lane = jnp.tile(beta.astype(jnp.float32), H).reshape(1, HCout)
    return w2cat, m_mat, gamma_lane, beta_lane


@functools.partial(jax.jit, static_argnames=("eps",))
def conv_block_apply(x, w2cat, m_mat, gamma_lane, beta_lane, *, eps=1e-5):
    """x: (N, Cin, D, H, W) f32 -> ReLU(BN(Conv3d(x))) as (N, Cout, D, H, W) f32."""
    N, Cin, D, H, W = x.shape
    B = N * W
    BD = B * D
    K = H * Cin
    K3 = 3 * K
    HCout = gamma_lane.shape[-1]
    Cout = HCout // H
    assert w2cat.shape == (K3, HCout)

    # Layout plumbing (fused by jit): NCDHW -> (B, D, H*Cin), pad D only, then
    # concatenate the three kd row-bands along K and cast MXU operands to bf16.
    xb = jnp.transpose(x, (0, 4, 2, 3, 1)).reshape(B, D, K)
    xd = jnp.pad(xb, ((0, 0), (1, 1), (0, 0)))
    x_cat = jnp.concatenate([xd[:, kd:kd + D, :] for kd in range(3)], axis=-1)
    x_cat = x_cat.reshape(BD, K3).astype(jnp.bfloat16)

    # VMEM sizing: resident activation + double-buffered x/W2 + gather matrix + scratch.
    budget, vmem_limit = _vmem_budget_and_limit()
    usable = (budget * 4) // 5
    fixed = (BD * HCout * 4            # resident activation
             + 2 * K3 * HCout * 2      # W2 (double-buffer assumption)
             + 2 * HCout * HCout * 4   # channel-gather matrix
             + 4 * HCout * 4           # gamma/beta lanes
             + 2 * 8 * HCout * 4)      # psum/psq scratch (sublane padded)
    per_row = 2 * K3 * 2 + HCout * 4   # double-buffered bf16 x rows + f32 acc staging
    if fixed + 16 * per_row > usable:
        # TODO(synk): two-pass fallback for activations that do not fit VMEM.
        raise NotImplementedError("activation too large for the fused VMEM-resident path")
    TR = _pick_block_rows(BD, (usable - fixed) // per_row, align=16)
    T = BD // TR

    kern = functools.partial(fused_conv_bn_relu_kernel, rows_per_step=TR,
                             inv_count=1.0 / float(B * D * H), eps=float(eps))
    y = pl.pallas_call(
        kern,
        out_shape=jax.ShapeDtypeStruct((BD, HCout), jnp.float32),
        grid=(T,),
        in_specs=[
            pl.BlockSpec((TR, K3), lambda i: (i, 0)),
            pl.BlockSpec((K3, HCout), lambda i: (0, 0)),
            pl.BlockSpec((HCout, HCout), lambda i: (0, 0)),
            pl.BlockSpec((1, HCout), lambda i: (0, 0)),
            pl.BlockSpec((1, HCout), lambda i: (0, 0)),
        ],
        out_specs=pl.BlockSpec((BD, HCout), lambda i: (0, 0)),   # VMEM-resident output
        scratch_shapes=[pltpu.VMEM((1, HCout), jnp.float32),
                        pltpu.VMEM((1, HCout), jnp.float32)],
        compiler_params=pltpu.CompilerParams(
            dimension_semantics=("arbitrary",),
            vmem_limit_bytes=int(vmem_limit)),
    )(x_cat, w2cat, m_mat, gamma_lane, beta_lane)

    # glue: (B*D, H*Cout) -> (N, Cout, D, H, W)
    return y.reshape(N, W, D, H, Cout).transpose(0, 4, 2, 3, 1)


def _reference(x, weight, bias, gamma, beta, eps=1e-5, operand_dtype=jnp.float32):
    """Pure-JAX reference of the same forward pass (conv operands rounded to
    `operand_dtype` to mirror the kernel's MXU inputs when set to bf16)."""
    N, Cin, D, H, W = x.shape
    Cout = weight.shape[0]
    B = N * W
    xb = jnp.transpose(x, (0, 4, 2, 3, 1)).reshape(B, D, H, Cin)
    wk = jnp.transpose(weight[..., 0], (2, 3, 1, 0))
    xb = xb.astype(operand_dtype).astype(jnp.float32)
    wk = wk.astype(operand_dtype).astype(jnp.float32)
    conv = lax.conv_general_dilated(
        xb, wk, window_strides=(1, 1), padding=((1, 1), (1, 1)),
        dimension_numbers=("NHWC", "HWIO", "NHWC"),
        precision=lax.Precision.HIGHEST) + bias
    mean = conv.mean(axis=(0, 1, 2))
    var = conv.var(axis=(0, 1, 2))      # biased, as in PyTorch BN normalization
    y = jnp.maximum((conv - mean) / jnp.sqrt(var + eps) * gamma + beta, 0.0)
    return y.reshape(N, W, D, H, Cout).transpose(0, 4, 2, 3, 1)


if __name__ == "__main__":
    N, Cin, Cout, D, H, W = 2, 4, 8, 16, 16, 4

    key = jax.random.PRNGKey(0)
    kx, kw = jax.random.split(key)
    x = jax.random.normal(kx, (N, Cin, D, H, W), dtype=jnp.float32)

    # Deterministic params matching ConvBlock.__init__ (weight=None branch):
    # kaiming_normal_ conv weight (fan_in = Cin*3*3*1, gain sqrt(2)),
    # conv bias zeros, BN gamma = 1, beta = 0.
    fan_in = Cin * 3 * 3 * 1
    w = jax.random.normal(kw, (Cout, Cin, 3, 3, 1), dtype=jnp.float32) * jnp.sqrt(2.0 / fan_in)
    b = jnp.zeros((Cout,), jnp.float32)
    gamma = jnp.ones((Cout,), jnp.float32)
    beta = jnp.zeros((Cout,), jnp.float32)

    params = prepare_conv_block_params(w, b, gamma, beta, H)
    out = conv_block_apply(x, *params)
    out = jax.block_until_ready(out)
    assert out.shape == (N, Cout, D, H, W)

    # Tight check against a reference with identical bf16 operand rounding.
    ref_bf16 = _reference(x, w, b, gamma, beta, operand_dtype=jnp.bfloat16)
    err_bf16 = float(jnp.max(jnp.abs(out - ref_bf16)))
    assert jnp.allclose(out, ref_bf16, rtol=1e-3, atol=1e-3), err_bf16

    # Looser check against full-f32 module semantics (bf16 MXU operand rounding).
    ref_f32 = _reference(x, w, b, gamma, beta)
    err_f32 = float(jnp.max(jnp.abs(out - ref_f32)))
    assert jnp.allclose(out, ref_f32, rtol=5e-2, atol=5e-2), err_f32

    print("KERNEL_OK")
</pallas_src>

<mosaic_0001>
module attributes {stable_mosaic.version = 11 : i64} {
  func.func @fused_conv_bn_relu_kernel(%arg0: i32, %arg1: memref<128x192xbf16, #tpu.memory_space<vmem>>, %arg2: memref<192x128xbf16, #tpu.memory_space<vmem>>, %arg3: memref<128x128xf32, #tpu.memory_space<vmem>>, %arg4: memref<1x128xf32, #tpu.memory_space<vmem>>, %arg5: memref<1x128xf32, #tpu.memory_space<vmem>>, %arg6: memref<128x128xf32, #tpu.memory_space<vmem>>, %arg7: memref<1x128xf32, #tpu.memory_space<vmem>>, %arg8: memref<1x128xf32, #tpu.memory_space<vmem>>) attributes {dimension_semantics = [#tpu.dimension_semantics<arbitrary>], iteration_bounds = array<i64: 1>, scalar_prefetch = 0 : i64, scratch_operands = 2 : i64, tpu.core_type = #tpu.core_type<tc>, window_params = [{transform_indices = @transform_0, window_bounds = array<i64: 128, 192>}, {pipeline_mode = #tpu.pipeline_mode<synchronous>, transform_indices = @transform_1, window_bounds = array<i64: 192, 128>}, {pipeline_mode = #tpu.pipeline_mode<synchronous>, transform_indices = @transform_2, window_bounds = array<i64: 128, 128>}, {pipeline_mode = #tpu.pipeline_mode<synchronous>, transform_indices = @transform_3, window_bounds = array<i64: 1, 128>}, {pipeline_mode = #tpu.pipeline_mode<synchronous>, transform_indices = @transform_4, window_bounds = array<i64: 1, 128>}, {pipeline_mode = #tpu.pipeline_mode<synchronous>, transform_indices = @transform_5, window_bounds = array<i64: 128, 128>}]} {
    %c0_i32 = arith.constant 0 : i32
    %0 = arith.cmpi eq, %arg0, %c0_i32 : i32
    %1 = arith.extui %0 : i1 to i32
    %c0_i32_0 = arith.constant 0 : i32
    %2 = arith.cmpi ne, %1, %c0_i32_0 : i32
    scf.if %2 {
      %cst_17 = arith.constant 0.000000e+00 : f32
      %24 = vector.broadcast %cst_17 : f32 to vector<1x128xf32>
      %c0_18 = arith.constant 0 : index
      %c0_19 = arith.constant 0 : index
      %25 = vector.load %arg7[%c0_18, %c0_19] : memref<1x128xf32, #tpu.memory_space<vmem>>, vector<1x128xf32>
      tpu.vector_store %arg7[%c0_18, %c0_19], %24 {strides = array<i32>} : memref<1x128xf32, #tpu.memory_space<vmem>>, vector<1x128xf32>,
      %cst_20 = arith.constant 0.000000e+00 : f32
      %26 = vector.broadcast %cst_20 : f32 to vector<1x128xf32>
      %c0_21 = arith.constant 0 : index
      %c0_22 = arith.constant 0 : index
      %27 = vector.load %arg8[%c0_21, %c0_22] : memref<1x128xf32, #tpu.memory_space<vmem>>, vector<1x128xf32>
      tpu.vector_store %arg8[%c0_21, %c0_22], %26 {strides = array<i32>} : memref<1x128xf32, #tpu.memory_space<vmem>>, vector<1x128xf32>,
    } else {
    }
    %c0 = arith.constant 0 : index
    %c0_1 = arith.constant 0 : index
    %3 = vector.load %arg1[%c0, %c0_1] : memref<128x192xbf16, #tpu.memory_space<vmem>>, vector<128x192xbf16>
    %c0_2 = arith.constant 0 : index
    %c0_3 = arith.constant 0 : index
    %4 = vector.load %arg2[%c0_2, %c0_3] : memref<192x128xbf16, #tpu.memory_space<vmem>>, vector<192x128xbf16>
    %cst = arith.constant dense<0.000000e+00> : vector<128x128xf32>
    %5 = tpu.matmul %3, %4, %cst {dimension_numbers = #tpu.dot_dimension_numbers<[1], [0], [0], [1], [0, 0, 1, 1], [], []>} : vector<128x192xbf16>, vector<192x128xbf16>, vector<128x128xf32> -> vector<128x128xf32>
    %c0_4 = arith.constant 0 : index
    %c0_5 = arith.constant 0 : index
    %6 = vector.load %arg7[%c0_4, %c0_5] : memref<1x128xf32, #tpu.memory_space<vmem>>, vector<1x128xf32>
    %cst_6 = arith.constant dense<0.000000e+00> : vector<128xf32>
    %7 = vector.multi_reduction <add>, %5, %cst_6 [0] : vector<128x128xf32> to vector<128xf32>
    %8 = vector.shape_cast %7 : vector<128xf32> to vector<1x128xf32>
    %9 = arith.addf %6, %8 : vector<1x128xf32>
    %c0_7 = arith.constant 0 : index
    %c0_8 = arith.constant 0 : index
    %10 = vector.load %arg7[%c0_7, %c0_8] : memref<1x128xf32, #tpu.memory_space<vmem>>, vector<1x128xf32>
    tpu.vector_store %arg7[%c0_7, %c0_8], %9 {strides = array<i32>} : memref<1x128xf32, #tpu.memory_space<vmem>>, vector<1x128xf32>,
    %c0_9 = arith.constant 0 : index
    %c0_10 = arith.constant 0 : index
    %11 = vector.load %arg8[%c0_9, %c0_10] : memref<1x128xf32, #tpu.memory_space<vmem>>, vector<1x128xf32>
    %12 = arith.mulf %5, %5 : vector<128x128xf32>
    %cst_11 = arith.constant dense<0.000000e+00> : vector<128xf32>
    %13 = vector.multi_reduction <add>, %12, %cst_11 [0] : vector<128x128xf32> to vector<128xf32>
    %14 = vector.shape_cast %13 : vector<128xf32> to vector<1x128xf32>
    %15 = arith.addf %11, %14 : vector<1x128xf32>
    %c0_12 = arith.constant 0 : index
    %c0_13 = arith.constant 0 : index
    %16 = vector.load %arg8[%c0_12, %c0_13] : memref<1x128xf32, #tpu.memory_space<vmem>>, vector<1x128xf32>
    tpu.vector_store %arg8[%c0_12, %c0_13], %15 {strides = array<i32>} : memref<1x128xf32, #tpu.memory_space<vmem>>, vector<1x128xf32>,
    %c128_i32 = arith.constant 128 : i32
    %17 = arith.muli %arg0, %c128_i32 : i32
    %18 = tpu.assume_multiple %17, 128 : i32
    %19 = arith.index_cast %18 : i32 to index
    %c0_14 = arith.constant 0 : index
    %20 = vector.load %arg6[%19, %c0_14] : memref<128x128xf32, #tpu.memory_space<vmem>>, vector<128x128xf32>
    tpu.vector_store %arg6[%19, %c0_14], %5 {strides = array<i32>} : memref<128x128xf32, #tpu.memory_space<vmem>>, vector<128x128xf32>,
    %c0_i32_15 = arith.constant 0 : i32
    %21 = arith.cmpi eq, %arg0, %c0_i32_15 : i32
    %22 = arith.extui %21 : i1 to i32
    %c0_i32_16 = arith.constant 0 : i32
    %23 = arith.cmpi ne, %22, %c0_i32_16 : i32
    scf.if %23 {
      %c0_17 = arith.constant 0 : index
      %c0_18 = arith.constant 0 : index
      %24 = vector.load %arg7[%c0_17, %c0_18] : memref<1x128xf32, #tpu.memory_space<vmem>>, vector<1x128xf32>
      %c0_19 = arith.constant 0 : index
      %c0_20 = arith.constant 0 : index
      %25 = vector.load %arg3[%c0_19, %c0_20] : memref<128x128xf32, #tpu.memory_space<vmem>>, vector<128x128xf32>
      %cst_21 = arith.constant dense<0.000000e+00> : vector<1x128xf32>
      %26 = tpu.matmul %24, %25, %cst_21 {dimension_numbers = #tpu.dot_dimension_numbers<[1], [0], [0], [1], [0, 0, 1, 1], [], []>} : vector<1x128xf32>, vector<128x128xf32>, vector<1x128xf32> -> vector<1x128xf32>
      %c0_22 = arith.constant 0 : index
      %c0_23 = arith.constant 0 : index
      %27 = vector.load %arg8[%c0_22, %c0_23] : memref<1x128xf32, #tpu.memory_space<vmem>>, vector<1x128xf32>
      %c0_24 = arith.constant 0 : index
      %c0_25 = arith.constant 0 : index
      %28 = vector.load %arg3[%c0_24, %c0_25] : memref<128x128xf32, #tpu.memory_space<vmem>>, vector<128x128xf32>
      %cst_26 = arith.constant dense<0.000000e+00> : vector<1x128xf32>
      %29 = tpu.matmul %27, %28, %cst_26 {dimension_numbers = #tpu.dot_dimension_numbers<[1], [0], [0], [1], [0, 0, 1, 1], [], []>} : vector<1x128xf32>, vector<128x128xf32>, vector<1x128xf32> -> vector<1x128xf32>
      %cst_27 = arith.constant 4.8828125E-4 : f32
      %30 = vector.broadcast %cst_27 : f32 to vector<1x128xf32>
      %31 = arith.mulf %26, %30 : vector<1x128xf32>
      %cst_28 = arith.constant 4.8828125E-4 : f32
      %32 = vector.broadcast %cst_28 : f32 to vector<1x128xf32>
      %33 = arith.mulf %29, %32 : vector<1x128xf32>
      %34 = arith.mulf %31, %31 : vector<1x128xf32>
      %35 = arith.subf %33, %34 : vector<1x128xf32>
      %cst_29 = arith.constant 0.000000e+00 : f32
      %36 = vector.broadcast %cst_29 : f32 to vector<1x128xf32>
      %37 = arith.maximumf %35, %36 : vector<1x128xf32>
      %c0_30 = arith.constant 0 : index
      %c0_31 = arith.constant 0 : index
      %38 = vector.load %arg4[%c0_30, %c0_31] : memref<1x128xf32, #tpu.memory_space<vmem>>, vector<1x128xf32>
      %cst_32 = arith.constant 9.99999974E-6 : f32
      %39 = vector.broadcast %cst_32 : f32 to vector<1x128xf32>
      %40 = arith.addf %37, %39 : vector<1x128xf32>
      %41 = math.rsqrt %40 : vector<1x128xf32>
      %42 = arith.mulf %38, %41 : vector<1x128xf32>
      %c0_33 = arith.constant 0 : index
      %c0_34 = arith.constant 0 : index
      %43 = vector.load %arg5[%c0_33, %c0_34] : memref<1x128xf32, #tpu.memory_space<vmem>>, vector<1x128xf32>
      %44 = arith.mulf %31, %42 : vector<1x128xf32>
      %45 = arith.subf %43, %44 : vector<1x128xf32>
      %c0_35 = arith.constant 0 : index
      %c0_36 = arith.constant 0 : index
      %46 = vector.load %arg6[%c0_35, %c0_36] : memref<128x128xf32, #tpu.memory_space<vmem>>, vector<128x128xf32>
      %47 = vector.broadcast %42 : vector<1x128xf32> to vector<128x128xf32>
      %48 = arith.mulf %46, %47 : vector<128x128xf32>
      %49 = vector.broadcast %45 : vector<1x128xf32> to vector<128x128xf32>
      %50 = arith.addf %48, %49 : vector<128x128xf32>
      %cst_37 = arith.constant 0.000000e+00 : f32
      %51 = vector.broadcast %cst_37 : f32 to vector<128x128xf32>
      %52 = arith.maximumf %50, %51 : vector<128x128xf32>
      %c0_38 = arith.constant 0 : index
      %c0_39 = arith.constant 0 : index
      %53 = vector.load %arg6[%c0_38, %c0_39] : memref<128x128xf32, #tpu.memory_space<vmem>>, vector<128x128xf32>
      tpu.vector_store %arg6[%c0_38, %c0_39], %52 {strides = array<i32>} : memref<128x128xf32, #tpu.memory_space<vmem>>, vector<128x128xf32>,
    } else {
    }
    return
  }
  func.func @transform_0(%arg0: i32) -> (i32, i32) {
    %c0_i32 = arith.constant 0 : i32
    %c0_i32_0 = arith.constant 0 : i32
    return %arg0, %c0_i32 : i32, i32
  }
  func.func @transform_1(%arg0: i32) -> (i32, i32) {
    %c0_i32 = arith.constant 0 : i32
    %c0_i32_0 = arith.constant 0 : i32
    %c0_i32_1 = arith.constant 0 : i32
    return %c0_i32, %c0_i32_0 : i32, i32
  }
  func.func @transform_2(%arg0: i32) -> (i32, i32) {
    %c0_i32 = arith.constant 0 : i32
    %c0_i32_0 = arith.constant 0 : i32
    %c0_i32_1 = arith.constant 0 : i32
    return %c0_i32, %c0_i32_0 : i32, i32
  }
  func.func @transform_3(%arg0: i32) -> (i32, i32) {
    %c0_i32 = arith.constant 0 : i32
    %c0_i32_0 = arith.constant 0 : i32
    %c0_i32_1 = arith.constant 0 : i32
    return %c0_i32, %c0_i32_0 : i32, i32
  }
  func.func @transform_4(%arg0: i32) -> (i32, i32) {
    %c0_i32 = arith.constant 0 : i32
    %c0_i32_0 = arith.constant 0 : i32
    %c0_i32_1 = arith.constant 0 : i32
    return %c0_i32, %c0_i32_0 : i32, i32
  }
  func.func @transform_5(%arg0: i32) -> (i32, i32) {
    %c0_i32 = arith.constant 0 : i32
    %c0_i32_0 = arith.constant 0 : i32
    %c0_i32_1 = arith.constant 0 : i32
    return %c0_i32, %c0_i32_0 : i32, i32
  }
}

</mosaic_0001>

<llo_original>
// kernel: conv_block_apply.1
$region0: #{conv_block_apply.1}
  #allocation0 [shape = 'u32[]', space=smem, size = 0x4, offset = 0x4, fixed_abs, tag = 'smem constant byte address 0x4 - core index']
  #allocation1 [shape = 'u32[144,128]{1,0:T(1,128)}', space=vmem, size = 0x12000, scoped, tag = 'internal scratch']
  #allocation2 [shape = 'f32[1,128]{1,0:T(1,128)}', space=vmem, size = 0x200, scoped, tag = 'scratch operand']
  #allocation3 [shape = 'f32[1,128]{1,0:T(1,128)}', space=vmem, size = 0x200, scoped, tag = 'scratch operand']
  %s0 = inlined_call_operand.vmem [shape: bf16[128,192], index: 0, kind: input, shape index: {}]
  %s1 = inlined_call_operand.vmem [shape: bf16[192,128], index: 1, kind: input, shape index: {}]
  %s2 = inlined_call_operand.vmem [shape: f32[128,128], index: 2, kind: input, shape index: {}]
  %s3 = inlined_call_operand.vmem [shape: f32[1,128], index: 3, kind: input, shape index: {}]
  %s4 = inlined_call_operand.vmem [shape: f32[1,128], index: 4, kind: input, shape index: {}]
  %s5 = inlined_call_operand.vmem [shape: f32[128,128], index: 5, kind: output, shape index: {}]
  %s6 = sld [smem:[#allocation0]]
  $region38: #{conv_block_apply.1} parent=0
    _
  %s8 = ssub.s32 1, %s6
  %s9 = scalar_select 0, %s8, %s6
  // Predicated region
  $region2: #{conv_block_apply.1} parent=0 // pred_check
    _
  $region3: #{conv_block_apply.1} parent=0 // pred_check_branch
    %11 = sbr.rel (0) target = $region5
  $region4: #{conv_block_apply.1} parent=0 // pred_region
    _
  $region5: #{conv_block_apply.1} parent=0 // pred_fallthru
    _
  // Predicated region
  $region6: #{conv_block_apply.1} parent=0 // pred_check
    _
  $region7: #{conv_block_apply.1} parent=0 // pred_check_branch
    %13 = sbr.rel (0) target = $region9
  $region8: #{conv_block_apply.1} parent=0 // pred_region
    _
  $region9: #{conv_block_apply.1} parent=0 // pred_fallthru
    _
  // Predicated region
  $region10: #{conv_block_apply.1} parent=0 // pred_check
    _
  $region11: #{conv_block_apply.1} parent=0 // pred_check_branch
    %15 = sbr.rel (0) target = $region13
  $region12: #{conv_block_apply.1} parent=0 // pred_region
    _
  $region13: #{conv_block_apply.1} parent=0 // pred_fallthru
    _
  // Predicated region
  $region14: #{conv_block_apply.1} parent=0 // pred_check
    _
  $region15: #{conv_block_apply.1} parent=0 // pred_check_branch
    %17 = sbr.rel (0) target = $region17
  $region16: #{conv_block_apply.1} parent=0 // pred_region
    _
  $region17: #{conv_block_apply.1} parent=0 // pred_fallthru
    _
  // Predicated region
  $region18: #{conv_block_apply.1} parent=0 // pred_check
    _
  $region19: #{conv_block_apply.1} parent=0 // pred_check_branch
    %19 = sbr.rel (0) target = $region21
  $region20: #{conv_block_apply.1} parent=0 // pred_region
    _
  $region21: #{conv_block_apply.1} parent=0 // pred_fallthru
    _
  %p21 = scmp.eq.s32.totalorder 0, 0
  // Predicated region
  $region22: #{conv_block_apply.1} parent=0 // pred_check
    %p22 = pneg %p21
  $region23: #{conv_block_apply.1} parent=0 // pred_check_branch
    %24 = sbr.rel (%p22) target = $region25
  $region24: #{conv_block_apply.1} parent=0 // pred_region
    %25 = vst [vmem:[#allocation2] sm:$0x1] 0.0
    %26 = vst [vmem:[#allocation3] sm:$0x1] 0.0
  $region25: #{conv_block_apply.1} parent=0 // pred_fallthru
    _
  %v27 = vld [vmem:[%s0] sm:$0xff]
  %v28 = vld [vmem:[%s0 + $0x8] sm:$0xff]
  %v29 = vld [vmem:[%s0 + $0x10] sm:$0xff]
  %v30 = vld [vmem:[%s0 + $0x18] sm:$0xff]
  %v31 = vld [vmem:[%s0 + $0x20] sm:$0xff]
  %v32 = vld [vmem:[%s0 + $0x28] sm:$0xff]
  %v33 = vld [vmem:[%s0 + $0x30] sm:$0xff]
  %v34 = vld [vmem:[%s0 + $0x38] sm:$0xff]
  %v35 = vld [vmem:[%s0 + $0x40] sm:$0xff]
  %v36 = vld [vmem:[%s0 + $0x48] sm:$0xff]
  %v37 = vld [vmem:[%s0 + $0x50] sm:$0xff]
  %v38 = vld [vmem:[%s0 + $0x58] sm:$0xff]
  %v39 = vld [vmem:[%s0 + $0x60] sm:$0xff]
  %v40 = vld [vmem:[%s0 + $0x68] sm:$0xff]
  %v41 = vld [vmem:[%s0 + $0x70] sm:$0xff]
  %v42 = vld [vmem:[%s0 + $0x78] sm:$0xff]
  %v43 = vld [vmem:[%s1] sm:$0xf]
  %v44 = vld [vmem:[%s1 + $0x4] sm:$0xf]
  %v45 = vld [vmem:[%s1 + $0x8] sm:$0xf]
  %v46 = vld [vmem:[%s1 + $0xc] sm:$0xf]
  %v47 = vld [vmem:[%s1 + $0x10] sm:$0xf]
  %v48 = vld [vmem:[%s1 + $0x14] sm:$0xf]
  %v49 = vld [vmem:[%s1 + $0x18] sm:$0xf]
  %v50 = vld [vmem:[%s1 + $0x1c] sm:$0xf]
  %v51 = vld [vmem:[%s1 + $0x20] sm:$0xf]
  %v52 = vld [vmem:[%s1 + $0x24] sm:$0xf]
  %v53 = vld [vmem:[%s1 + $0x28] sm:$0xf]
  %v54 = vld [vmem:[%s1 + $0x2c] sm:$0xf]
  %v55 = vld [vmem:[%s1 + $0x30] sm:$0xf]
  %v56 = vld [vmem:[%s1 + $0x34] sm:$0xf]
  %v57 = vld [vmem:[%s1 + $0x38] sm:$0xf]
  %v58 = vld [vmem:[%s1 + $0x3c] sm:$0xf]
  %v59 = vld [vmem:[%s1 + $0x40] sm:$0xf]
  %v60 = vld [vmem:[%s1 + $0x44] sm:$0xf]
  %v61 = vld [vmem:[%s1 + $0x48] sm:$0xf]
  %v62 = vld [vmem:[%s1 + $0x4c] sm:$0xf]
  %v63 = vld [vmem:[%s1 + $0x50] sm:$0xf]
  %v64 = vld [vmem:[%s1 + $0x54] sm:$0xf]
  %v65 = vld [vmem:[%s1 + $0x58] sm:$0xf]
  %v66 = vld [vmem:[%s1 + $0x5c] sm:$0xf]
  %v83 = vunpack.c.l.b16 %v27
  %v84 = vunpack.c.h.b16 %v27
  %v85 = vunpack.c.l.b16 %v28
  %v86 = vunpack.c.h.b16 %v28
  %v87 = vunpack.c.l.b16 %v29
  %v88 = vunpack.c.h.b16 %v29
  %v89 = vunpack.c.l.b16 %v30
  %v90 = vunpack.c.h.b16 %v30
  %v91 = vunpack.c.l.b16 %v31
  %v92 = vunpack.c.h.b16 %v31
  %v93 = vunpack.c.l.b16 %v32
  %v94 = vunpack.c.h.b16 %v32
  %v95 = vunpack.c.l.b16 %v33
  %v96 = vunpack.c.h.b16 %v33
  %v97 = vunpack.c.l.b16 %v34
  %v98 = vunpack.c.h.b16 %v34
  %v99 = vunpack.c.l.b16 %v35
  %v100 = vunpack.c.h.b16 %v35
  %v101 = vunpack.c.l.b16 %v36
  %v102 = vunpack.c.h.b16 %v36
  %v103 = vunpack.c.l.b16 %v37
  %v104 = vunpack.c.h.b16 %v37
  %v105 = vunpack.c.l.b16 %v38
  %v106 = vunpack.c.h.b16 %v38
  %v107 = vunpack.c.l.b16 %v39
  %v108 = vunpack.c.h.b16 %v39
  %v109 = vunpack.c.l.b16 %v40
  %v110 = vunpack.c.h.b16 %v40
  %v111 = vunpack.c.l.b16 %v41
  %v112 = vunpack.c.h.b16 %v41
  %v113 = vunpack.c.l.b16 %v42
  %v114 = vunpack.c.h.b16 %v42
  %v115 = vpack.c.b16 %v85, %v83
  %v116 = vpack.c.b16 %v86, %v84
  %v117 = vpack.c.b16 %v89, %v87
  %v118 = vpack.c.b16 %v90, %v88
  %v119 = vpack.c.b16 %v93, %v91
  %v120 = vpack.c.b16 %v94, %v92
  %v121 = vpack.c.b16 %v97, %v95
  %v122 = vpack.c.b16 %v98, %v96
  %v123 = vpack.c.b16 %v101, %v99
  %v124 = vpack.c.b16 %v102, %v100
  %v125 = vpack.c.b16 %v105, %v103
  %v126 = vpack.c.b16 %v106, %v104
  %v127 = vpack.c.b16 %v109, %v107
  %v128 = vpack.c.b16 %v110, %v108
  %v129 = vpack.c.b16 %v113, %v111
  %v130 = vpack.c.b16 %v114, %v112
  %v163 = vunpack.c.l.b16 %v43
  %v164 = vunpack.c.l.b16 %v44
  %v165 = vunpack.c.l.b16 %v45
  %v166 = vunpack.c.l.b16 %v46
  %v167 = vunpack.c.l.b16 %v47
  %v168 = vunpack.c.l.b16 %v48
  %v169 = vunpack.c.l.b16 %v49
  %v170 = vunpack.c.l.b16 %v50
  %v171 = vunpack.c.l.b16 %v51
  %v172 = vunpack.c.l.b16 %v52
  %v173 = vunpack.c.l.b16 %v53
  %v174 = vunpack.c.l.b16 %v54
  %v175 = vunpack.c.l.b16 %v55
  %v176 = vunpack.c.l.b16 %v56
  %v177 = vunpack.c.l.b16 %v57
  %v178 = vunpack.c.l.b16 %v58
  %v179 = vunpack.c.l.b16 %v59
  %v180 = vunpack.c.l.b16 %v60
  %v181 = vunpack.c.l.b16 %v61
  %v182 = vunpack.c.l.b16 %v62
  %v183 = vunpack.c.l.b16 %v63
  %v184 = vunpack.c.l.b16 %v64
  %v185 = vunpack.c.l.b16 %v65
  %v186 = vunpack.c.l.b16 %v66
  %v187 = vpack.c.b16 %v164, %v163
  %v188 = vpack.c.b16 %v166, %v165
  %v189 = vpack.c.b16 %v168, %v167
  %v190 = vpack.c.b16 %v170, %v169
  %v191 = vpack.c.b16 %v172, %v171
  %v192 = vpack.c.b16 %v174, %v173
  %v193 = vpack.c.b16 %v176, %v175
  %v194 = vpack.c.b16 %v178, %v177
  %v195 = vpack.c.b16 %v180, %v179
  %v196 = vpack.c.b16 %v182, %v181
  %v197 = vpack.c.b16 %v184, %v183
  %v198 = vpack.c.b16 %v186, %v185
  %vm211 = vcmask 523264
  %v213 = vsel %vm211, %v116, 0
  %v216 = vsel %vm211, %v118, 0
  %v219 = vsel %vm211, %v120, 0
  %v222 = vsel %vm211, %v122, 0
  %v225 = vsel %vm211, %v124, 0
  %v228 = vsel %vm211, %v126, 0
  %v231 = vsel %vm211, %v128, 0
  %v234 = vsel %vm211, %v130, 0
  %236 = vmatprep.subr.bf16.mxu0 0
  %237 = vmatpush1.bf16.msra.mxu0 %v194
  %238 = vmatprep.subr.bf16.mxu0 0
  %239 = vmatpush1.bf16.msra.mxu0 %v193
  %240 = vmatprep.subr.bf16.mxu0 0
  %241 = vmatpush1.bf16.msra.mxu0 %v192
  %242 = vmatprep.subr.bf16.mxu0 0
  %243 = vmatpush1.bf16.msra.mxu0 %v191
  %244 = vmatprep.subr.bf16.mxu0 0
  %245 = vmatpush1.bf16.msra.mxu0 %v190
  %246 = vmatprep.subr.bf16.mxu0 0
  %247 = vmatpush1.bf16.msra.mxu0 %v189
  %248 = vmatprep.subr.bf16.mxu0 0
  %249 = vmatpush1.bf16.msra.mxu0 %v188
  %250 = vmatprep.subr.bf16.mxu0 0
  %251 = vmatpush1.bf16.msra.mxu0 %v187
  %252 = vmatprep.subr.bf16.mxu0 0
  %253 = vmatpush2.bf16.msra.mxu0 0
  %254 = vmatprep.subr.bf16.mxu0 0
  %255 = vmatpush2.bf16.msra.mxu0 0
  %256 = vmatprep.subr.bf16.mxu0 0
  %257 = vmatpush2.bf16.msra.mxu0 0
  %258 = vmatprep.subr.bf16.mxu0 0
  %259 = vmatpush2.bf16.msra.mxu0 0
  %260 = vmatprep.subr.bf16.mxu0 0
  %261 = vmatpush2.bf16.msra.mxu0 %v198
  %262 = vmatprep.subr.bf16.mxu0 0
  %263 = vmatpush2.bf16.msra.mxu0 %v197
  %264 = vmatprep.subr.bf16.mxu0 0
  %265 = vmatpush2.bf16.msra.mxu0 %v196
  %266 = vmatprep.subr.bf16.mxu0 0
  %267 = vmatpush2.bf16.msra.mxu0 %v195
  %268 = vmatprep.mubr.bf16.mxu0 %v213
  %269 = vmatmul.mubr.bf16.gmra.mxu0 %v115
  %v270 = vpop.f32.mrf.mxu0
  %v271 = vadd.f32 0.0, %v270
  %v272 = vpop.f32.mrf.mxu0
  %v273 = vpop.f32.mrf.mxu0
  %v274 = vadd.f32 0.0, %v273
  %v275 = vpop.f32.mrf.mxu0
  %276 = vmatprep.mubr.bf16.mxu0 %v216
  %277 = vmatmul.mubr.bf16.gmra.mxu0 %v117
  %v278 = vpop.f32.mrf.mxu0
  %v279 = vadd.f32 0.0, %v278
  %v280 = vpop.f32.mrf.mxu0
  %v281 = vpop.f32.mrf.mxu0
  %v282 = vadd.f32 0.0, %v281
  %v283 = vpop.f32.mrf.mxu0
  %284 = vmatprep.mubr.bf16.mxu0 %v219
  %285 = vmatmul.mubr.bf16.gmra.mxu0 %v119
  %v286 = vpop.f32.mrf.mxu0
  %v287 = vadd.f32 0.0, %v286
  %v288 = vpop.f32.mrf.mxu0
  %v289 = vpop.f32.mrf.mxu0
  %v290 = vadd.f32 0.0, %v289
  %v291 = vpop.f32.mrf.mxu0
  %292 = vmatprep.mubr.bf16.mxu0 %v222
  %293 = vmatmul.mubr.bf16.gmra.mxu0 %v121
  %v294 = vpop.f32.mrf.mxu0
  %v295 = vadd.f32 0.0, %v294
  %v296 = vpop.f32.mrf.mxu0
  %v297 = vpop.f32.mrf.mxu0
  %v298 = vadd.f32 0.0, %v297
  %v299 = vpop.f32.mrf.mxu0
  %300 = vmatprep.mubr.bf16.mxu0 %v225
  %301 = vmatmul.mubr.bf16.gmra.mxu0 %v123
  %v302 = vpop.f32.mrf.mxu0
  %v303 = vadd.f32 0.0, %v302
  %v304 = vpop.f32.mrf.mxu0
  %v305 = vpop.f32.mrf.mxu0
  %v306 = vadd.f32 0.0, %v305
  %v307 = vpop.f32.mrf.mxu0
  %308 = vmatprep.mubr.bf16.mxu0 %v228
  %309 = vmatmul.mubr.bf16.gmra.mxu0 %v125
  %v310 = vpop.f32.mrf.mxu0
  %v311 = vadd.f32 0.0, %v310
  %v312 = vpop.f32.mrf.mxu0
  %v313 = vpop.f32.mrf.mxu0
  %v314 = vadd.f32 0.0, %v313
  %v315 = vpop.f32.mrf.mxu0
  %316 = vmatprep.mubr.bf16.mxu0 %v231
  %317 = vmatmul.mubr.bf16.gmra.mxu0 %v127
  %v318 = vpop.f32.mrf.mxu0
  %v319 = vadd.f32 0.0, %v318
  %v320 = vpop.f32.mrf.mxu0
  %v321 = vpop.f32.mrf.mxu0
  %v322 = vadd.f32 0.0, %v321
  %v323 = vpop.f32.mrf.mxu0
  %324 = vmatprep.mubr.bf16.mxu0 %v234
  %325 = vmatmul.mubr.bf16.gmra.mxu0 %v129
  %v326 = vpop.f32.mrf.mxu0
  %v327 = vadd.f32 0.0, %v326
  %v328 = vpop.f32.mrf.mxu0
  %v329 = vpop.f32.mrf.mxu0
  %v330 = vadd.f32 0.0, %v329
  %v331 = vpop.f32.mrf.mxu0
  %332 = vdwg.mxu0
  %v333 = vld [vmem:[#allocation2] sm:$0x1]
  %v334 = vadd.f32 %v271, %v274
  %v335 = vadd.f32 %v334, %v279
  %v336 = vadd.f32 %v335, %v282
  %v337 = vadd.f32 %v336, %v287
  %v338 = vadd.f32 %v337, %v290
  %v339 = vadd.f32 %v338, %v295
  %v340 = vadd.f32 %v339, %v298
  %v341 = vadd.f32 %v340, %v303
  %v342 = vadd.f32 %v341, %v306
  %v343 = vadd.f32 %v342, %v311
  %v344 = vadd.f32 %v343, %v314
  %v345 = vadd.f32 %v344, %v319
  %v346 = vadd.f32 %v345, %v322
  %v347 = vadd.f32 %v346, %v327
  %v348 = vadd.f32 %v347, %v330
  %v349 = vrot.slane %v348, 4
  %v350 = vadd.f32 %v348, %v349
  %v351 = vrot.slane %v350, 2
  %v352 = vadd.f32 %v350, %v351
  %v353 = vrot.slane %v352, 1
  %v354 = vadd.f32 %v352, %v353
  %v355 = vadd.f32 %v333, %v354
  %356 = vst [vmem:[#allocation2] sm:$0x1] %v355
  %v357 = vld [vmem:[#allocation3] sm:$0x1]
  %v358 = vmul.f32 %v271, %v271
  %v359 = vmul.f32 %v274, %v274
  %v360 = vmul.f32 %v279, %v279
  %v361 = vmul.f32 %v282, %v282
  %v362 = vmul.f32 %v287, %v287
  %v363 = vmul.f32 %v290, %v290
  %v364 = vmul.f32 %v295, %v295
  %v365 = vmul.f32 %v298, %v298
  %v366 = vmul.f32 %v303, %v303
  %v367 = vmul.f32 %v306, %v306
  %v368 = vmul.f32 %v311, %v311
  %v369 = vmul.f32 %v314, %v314
  %v370 = vmul.f32 %v319, %v319
  %v371 = vmul.f32 %v322, %v322
  %v372 = vmul.f32 %v327, %v327
  %v373 = vmul.f32 %v330, %v330
  %v374 = vadd.f32 %v358, %v359
  %v375 = vadd.f32 %v374, %v360
  %v376 = vadd.f32 %v375, %v361
  %v377 = vadd.f32 %v376, %v362
  %v378 = vadd.f32 %v377, %v363
  %v379 = vadd.f32 %v378, %v364
  %v380 = vadd.f32 %v379, %v365
  %v381 = vadd.f32 %v380, %v366
  %v382 = vadd.f32 %v381, %v367
  %v383 = vadd.f32 %v382, %v368
  %v384 = vadd.f32 %v383, %v369
  %v385 = vadd.f32 %v384, %v370
  %v386 = vadd.f32 %v385, %v371
  %v387 = vadd.f32 %v386, %v372
  %v388 = vadd.f32 %v387, %v373
  %v389 = vrot.slane %v388, 4
  %v390 = vadd.f32 %v388, %v389
  %v391 = vrot.slane %v390, 2
  %v392 = vadd.f32 %v390, %v391
  %v393 = vrot.slane %v392, 1
  %v394 = vadd.f32 %v392, %v393
  %v395 = vadd.f32 %v357, %v394
  %396 = vst [vmem:[#allocation3] sm:$0x1] %v395
  %s397 = smul.u32 0, 128
  %s398 = scalar_lea.vmem %s5, %s397
  %399 = vst [vmem:[%s398] sm:$0xff] %v271
  %400 = vst [vmem:[%s398 + $0x8] sm:$0xff] %v274
  %401 = vst [vmem:[%s398 + $0x10] sm:$0xff] %v279
  %402 = vst [vmem:[%s398 + $0x18] sm:$0xff] %v282
  %403 = vst [vmem:[%s398 + $0x20] sm:$0xff] %v287
  %404 = vst [vmem:[%s398 + $0x28] sm:$0xff] %v290
  %405 = vst [vmem:[%s398 + $0x30] sm:$0xff] %v295
  %406 = vst [vmem:[%s398 + $0x38] sm:$0xff] %v298
  %407 = vst [vmem:[%s398 + $0x40] sm:$0xff] %v303
  %408 = vst [vmem:[%s398 + $0x48] sm:$0xff] %v306
  %409 = vst [vmem:[%s398 + $0x50] sm:$0xff] %v311
  %410 = vst [vmem:[%s398 + $0x58] sm:$0xff] %v314
  %411 = vst [vmem:[%s398 + $0x60] sm:$0xff] %v319
  %412 = vst [vmem:[%s398 + $0x68] sm:$0xff] %v322
  %413 = vst [vmem:[%s398 + $0x70] sm:$0xff] %v327
  %414 = vst [vmem:[%s398 + $0x78] sm:$0xff] %v330
  // Predicated region
  $region26: #{conv_block_apply.1} parent=0 // pred_check
    %p415 = pneg %p21
  $region27: #{conv_block_apply.1} parent=0 // pred_check_branch
    %417 = sbr.rel (%p415) target = $region29
  $region28: #{conv_block_apply.1} parent=0 // pred_region
    %v418 = vld [vmem:[#allocation2] sm:$0x1]
    %v419 = vld [vmem:[%s2] sm:$0xff]
    %v420 = vld [vmem:[%s2 + $0x8] sm:$0xff]
    %v421 = vld [vmem:[%s2 + $0x10] sm:$0xff]
    %v422 = vld [vmem:[%s2 + $0x18] sm:$0xff]
    %v423 = vld [vmem:[%s2 + $0x20] sm:$0xff]
    %v424 = vld [vmem:[%s2 + $0x28] sm:$0xff]
    %v425 = vld [vmem:[%s2 + $0x30] sm:$0xff]
    %v426 = vld [vmem:[%s2 + $0x38] sm:$0xff]
    %v427 = vld [vmem:[%s2 + $0x40] sm:$0xff]
    %v428 = vld [vmem:[%s2 + $0x48] sm:$0xff]
    %v429 = vld [vmem:[%s2 + $0x50] sm:$0xff]
    %v430 = vld [vmem:[%s2 + $0x58] sm:$0xff]
    %v431 = vld [vmem:[%s2 + $0x60] sm:$0xff]
    %v432 = vld [vmem:[%s2 + $0x68] sm:$0xff]
    %v433 = vld [vmem:[%s2 + $0x70] sm:$0xff]
    %v434 = vld [vmem:[%s2 + $0x78] sm:$0xff]
    %435 = vmatprep.subr.mxu0 0.0
    %436 = vmatpush1.msra.mxu0 %v434
    %437 = vmatprep.subr.mxu0 0.0
    %438 = vmatpush1.msra.mxu0 %v433
    %439 = vmatprep.subr.mxu0 0.0
    %440 = vmatpush1.msra.mxu0 %v432
    %441 = vmatprep.subr.mxu0 0.0
    %442 = vmatpush1.msra.mxu0 %v431
    %443 = vmatprep.subr.mxu0 0.0
    %444 = vmatpush1.msra.mxu0 %v430
    %445 = vmatprep.subr.mxu0 0.0
    %446 = vmatpush1.msra.mxu0 %v429
    %447 = vmatprep.subr.mxu0 0.0
    %448 = vmatpush1.msra.mxu0 %v428
    %449 = vmatprep.subr.mxu0 0.0
    %450 = vmatpush1.msra.mxu0 %v427
    %451 = vmatprep.subr.mxu0 0.0
    %452 = vmatpush1.msra.mxu0 %v426
    %453 = vmatprep.subr.mxu0 0.0
    %454 = vmatpush1.msra.mxu0 %v425
    %455 = vmatprep.subr.mxu0 0.0
    %456 = vmatpush1.msra.mxu0 %v424
    %457 = vmatprep.subr.mxu0 0.0
    %458 = vmatpush1.msra.mxu0 %v423
    %459 = vmatprep.subr.mxu0 0.0
    %460 = vmatpush1.msra.mxu0 %v422
    %461 = vmatprep.subr.mxu0 0.0
    %462 = vmatpush1.msra.mxu0 %v421
    %463 = vmatprep.subr.mxu0 0.0
    %464 = vmatpush1.msra.mxu0 %v420
    %465 = vmatprep.subr.mxu0 0.0
    %466 = vmatpush1.msra.mxu0 %v419
    %467 = vmatprep.subr.mxu0 0.0
    %468 = vmatpush2.msra.mxu0 0.0
    %469 = vmatprep.subr.mxu0 0.0
    %470 = vmatpush2.msra.mxu0 0.0
    %471 = vmatprep.subr.mxu0 0.0
    %472 = vmatpush2.msra.mxu0 0.0
    %473 = vmatprep.subr.mxu0 0.0
    %474 = vmatpush2.msra.mxu0 0.0
    %475 = vmatprep.subr.mxu0 0.0
    %476 = vmatpush2.msra.mxu0 0.0
    %477 = vmatprep.subr.mxu0 0.0
    %478 = vmatpush2.msra.mxu0 0.0
    %479 = vmatprep.subr.mxu0 0.0
    %480 = vmatpush2.msra.mxu0 0.0
    %481 = vmatprep.subr.mxu0 0.0
    %482 = vmatpush2.msra.mxu0 0.0
    %483 = vmatprep.subr.mxu0 0.0
    %484 = vmatpush2.msra.mxu0 0.0
    %485 = vmatprep.subr.mxu0 0.0
    %486 = vmatpush2.msra.mxu0 0.0
    %487 = vmatprep.subr.mxu0 0.0
    %488 = vmatpush2.msra.mxu0 0.0
    %489 = vmatprep.subr.mxu0 0.0
    %490 = vmatpush2.msra.mxu0 0.0
    %491 = vmatprep.subr.mxu0 0.0
    %492 = vmatpush2.msra.mxu0 0.0
    %493 = vmatprep.subr.mxu0 0.0
    %494 = vmatpush2.msra.mxu0 0.0
    %495 = vmatprep.subr.mxu0 0.0
    %496 = vmatpush2.msra.mxu0 0.0
    %497 = vmatprep.subr.mxu0 0.0
    %498 = vmatpush2.msra.mxu0 0.0
    %499 = vmatprep.mubr.f32.mxu0 0.0
    %500 = vmatmul.mubr.f32.gmra.mxu0 %v418
    %v501 = vpop.f32.mrf.mxu0
    %v502 = vadd.f32 0.0, %v501
    %v503 = vpop.f32.mrf.mxu0
    %504 = vdwg.mxu0
    %v505 = vld [vmem:[#allocation3] sm:$0x1]
    %506 = vmatprep.subr.mxu0 0.0
    %507 = vmatpush1.msra.mxu0 %v434
    %508 = vmatprep.subr.mxu0 0.0
    %509 = vmatpush1.msra.mxu0 %v433
    %510 = vmatprep.subr.mxu0 0.0
    %511 = vmatpush1.msra.mxu0 %v432
    %512 = vmatprep.subr.mxu0 0.0
    %513 = vmatpush1.msra.mxu0 %v431
    %514 = vmatprep.subr.mxu0 0.0
    %515 = vmatpush1.msra.mxu0 %v430
    %516 = vmatprep.subr.mxu0 0.0
    %517 = vmatpush1.msra.mxu0 %v429
    %518 = vmatprep.subr.mxu0 0.0
    %519 = vmatpush1.msra.mxu0 %v428
    %520 = vmatprep.subr.mxu0 0.0
    %521 = vmatpush1.msra.mxu0 %v427
    %522 = vmatprep.subr.mxu0 0.0
    %523 = vmatpush1.msra.mxu0 %v426
    %524 = vmatprep.subr.mxu0 0.0
    %525 = vmatpush1.msra.mxu0 %v425
    %526 = vmatprep.subr.mxu0 0.0
    %527 = vmatpush1.msra.mxu0 %v424
    %528 = vmatprep.subr.mxu0 0.0
    %529 = vmatpush1.msra.mxu0 %v423
    %530 = vmatprep.subr.mxu0 0.0
    %531 = vmatpush1.msra.mxu0 %v422
    %532 = vmatprep.subr.mxu0 0.0
    %533 = vmatpush1.msra.mxu0 %v421
    %534 = vmatprep.subr.mxu0 0.0
    %535 = vmatpush1.msra.mxu0 %v420
    %536 = vmatprep.subr.mxu0 0.0
    %537 = vmatpush1.msra.mxu0 %v419
    %538 = vmatprep.subr.mxu0 0.0
    %539 = vmatpush2.msra.mxu0 0.0
    %540 = vmatprep.subr.mxu0 0.0
    %541 = vmatpush2.msra.mxu0 0.0
    %542 = vmatprep.subr.mxu0 0.0
    %543 = vmatpush2.msra.mxu0 0.0
    %544 = vmatprep.subr.mxu0 0.0
    %545 = vmatpush2.msra.mxu0 0.0
    %546 = vmatprep.subr.mxu0 0.0
    %547 = vmatpush2.msra.mxu0 0.0
    %548 = vmatprep.subr.mxu0 0.0
    %549 = vmatpush2.msra.mxu0 0.0
    %550 = vmatprep.subr.mxu0 0.0
    %551 = vmatpush2.msra.mxu0 0.0
    %552 = vmatprep.subr.mxu0 0.0
    %553 = vmatpush2.msra.mxu0 0.0
    %554 = vmatprep.subr.mxu0 0.0
    %555 = vmatpush2.msra.mxu0 0.0
    %556 = vmatprep.subr.mxu0 0.0
    %557 = vmatpush2.msra.mxu0 0.0
    %558 = vmatprep.subr.mxu0 0.0
    %559 = vmatpush2.msra.mxu0 0.0
    %560 = vmatprep.subr.mxu0 0.0
    %561 = vmatpush2.msra.mxu0 0.0
    %562 = vmatprep.subr.mxu0 0.0
    %563 = vmatpush2.msra.mxu0 0.0
    %564 = vmatprep.subr.mxu0 0.0
    %565 = vmatpush2.msra.mxu0 0.0
    %566 = vmatprep.subr.mxu0 0.0
    %567 = vmatpush2.msra.mxu0 0.0
    %568 = vmatprep.subr.mxu0 0.0
    %569 = vmatpush2.msra.mxu0 0.0
    %570 = vmatprep.mubr.f32.mxu0 0.0
    %571 = vmatmul.mubr.f32.gmra.mxu0 %v505
    %v572 = vpop.f32.mrf.mxu0
    %v573 = vadd.f32 0.0, %v572
    %v574 = vpop.f32.mrf.mxu0
    %575 = vdwg.mxu0
    %v576 = vmul.f32 %v502, 0.00048828125
    %v577 = vmul.f32 %v573, 0.00048828125
    %v578 = vmul.f32 %v576, %v576
    %v579 = vsub.f32 %v577, %v578
    %v580 = vmax.f32 %v579, 0.0
    %v581 = vld [vmem:[%s3] sm:$0x1]
    %v582 = vadd.f32 %v580, 1e-05
    %v583 = vrsqrt.pop %v582
    %v584 = vmul.f32 %v581, %v583
    %v585 = vld [vmem:[%s4] sm:$0x1]
    %v586 = vmul.f32 %v576, %v584
    %v587 = vsub.f32 %v585, %v586
    %v588 = vld [vmem:[%s5] sm:$0xff]
    %v589 = vld [vmem:[%s5 + $0x8] sm:$0xff]
    %v590 = vld [vmem:[%s5 + $0x10] sm:$0xff]
    %v591 = vld [vmem:[%s5 + $0x18] sm:$0xff]
    %v592 = vld [vmem:[%s5 + $0x20] sm:$0xff]
    %v593 = vld [vmem:[%s5 + $0x28] sm:$0xff]
    %v594 = vld [vmem:[%s5 + $0x30] sm:$0xff]
    %v595 = vld [vmem:[%s5 + $0x38] sm:$0xff]
    %v596 = vld [vmem:[%s5 + $0x40] sm:$0xff]
    %v597 = vld [vmem:[%s5 + $0x48] sm:$0xff]
    %v598 = vld [vmem:[%s5 + $0x50] sm:$0xff]
    %v599 = vld [vmem:[%s5 + $0x58] sm:$0xff]
    %v600 = vld [vmem:[%s5 + $0x60] sm:$0xff]
    %v601 = vld [vmem:[%s5 + $0x68] sm:$0xff]
    %v602 = vld [vmem:[%s5 + $0x70] sm:$0xff]
    %v603 = vld [vmem:[%s5 + $0x78] sm:$0xff]
    %v605 = vlaneseq
    %v606 = vshrl.u32 %v605, 7
    %v607 = vsub.s32 0, %v606
    %v608 = vrot.slane %v584, %v607
    %v610 = vmul.f32 %v588, %v608
    %v611 = vmul.f32 %v589, %v608
    %v612 = vmul.f32 %v590, %v608
    %v613 = vmul.f32 %v591, %v608
    %v614 = vmul.f32 %v592, %v608
    %v615 = vmul.f32 %v593, %v608
    %v616 = vmul.f32 %v594, %v608
    %v617 = vmul.f32 %v595, %v608
    %v618 = vmul.f32 %v596, %v608
    %v619 = vmul.f32 %v597, %v608
    %v620 = vmul.f32 %v598, %v608
    %v621 = vmul.f32 %v599, %v608
    %v622 = vmul.f32 %v600, %v608
    %v623 = vmul.f32 %v601, %v608
    %v624 = vmul.f32 %v602, %v608
    %v625 = vmul.f32 %v603, %v608
    %v627 = vlaneseq
    %v628 = vshrl.u32 %v627, 7
    %v629 = vsub.s32 0, %v628
    %v630 = vrot.slane %v587, %v629
    %v632 = vadd.f32 %v610, %v630
    %v633 = vadd.f32 %v611, %v630
    %v634 = vadd.f32 %v612, %v630
    %v635 = vadd.f32 %v613, %v630
    %v636 = vadd.f32 %v614, %v630
    %v637 = vadd.f32 %v615, %v630
    %v638 = vadd.f32 %v616, %v630
    %v639 = vadd.f32 %v617, %v630
    %v640 = vadd.f32 %v618, %v630
    %v641 = vadd.f32 %v619, %v630
    %v642 = vadd.f32 %v620, %v630
    %v643 = vadd.f32 %v621, %v630
    %v644 = vadd.f32 %v622, %v630
    %v645 = vadd.f32 %v623, %v630
    %v646 = vadd.f32 %v624, %v630
    %v647 = vadd.f32 %v625, %v630
    %v648 = vmax.f32 %v632, 0.0
    %v649 = vmax.f32 %v633, 0.0
    %v650 = vmax.f32 %v634, 0.0
    %v651 = vmax.f32 %v635, 0.0
    %v652 = vmax.f32 %v636, 0.0
    %v653 = vmax.f32 %v637, 0.0
    %v654 = vmax.f32 %v638, 0.0
    %v655 = vmax.f32 %v639, 0.0
    %v656 = vmax.f32 %v640, 0.0
    %v657 = vmax.f32 %v641, 0.0
    %v658 = vmax.f32 %v642, 0.0
    %v659 = vmax.f32 %v643, 0.0
    %v660 = vmax.f32 %v644, 0.0
    %v661 = vmax.f32 %v645, 0.0
    %v662 = vmax.f32 %v646, 0.0
    %v663 = vmax.f32 %v647, 0.0
    %664 = vst [vmem:[%s5] sm:$0xff] %v648
    %665 = vst [vmem:[%s5 + $0x8] sm:$0xff] %v649
    %666 = vst [vmem:[%s5 + $0x10] sm:$0xff] %v650
    %667 = vst [vmem:[%s5 + $0x18] sm:$0xff] %v651
    %668 = vst [vmem:[%s5 + $0x20] sm:$0xff] %v652
    %669 = vst [vmem:[%s5 + $0x28] sm:$0xff] %v653
    %670 = vst [vmem:[%s5 + $0x30] sm:$0xff] %v654
    %671 = vst [vmem:[%s5 + $0x38] sm:$0xff] %v655
    %672 = vst [vmem:[%s5 + $0x40] sm:$0xff] %v656
    %673 = vst [vmem:[%s5 + $0x48] sm:$0xff] %v657
    %674 = vst [vmem:[%s5 + $0x50] sm:$0xff] %v658
    %675 = vst [vmem:[%s5 + $0x58] sm:$0xff] %v659
    %676 = vst [vmem:[%s5 + $0x60] sm:$0xff] %v660
    %677 = vst [vmem:[%s5 + $0x68] sm:$0xff] %v661
    %678 = vst [vmem:[%s5 + $0x70] sm:$0xff] %v662
    %679 = vst [vmem:[%s5 + $0x78] sm:$0xff] %v663
  $region29: #{conv_block_apply.1} parent=0 // pred_fallthru
    _
  // Predicated region
  $region30: #{conv_block_apply.1} parent=0 // pred_check
    _
  $region31: #{conv_block_apply.1} parent=0 // pred_check_branch
    %681 = sbr.rel (0) target = $region33
  $region32: #{conv_block_apply.1} parent=0 // pred_region
    _
  $region33: #{conv_block_apply.1} parent=0 // pred_fallthru
    _
  // Predicated region
  $region34: #{conv_block_apply.1} parent=0 // pred_check
    _
  $region35: #{conv_block_apply.1} parent=0 // pred_check_branch
    %683 = sbr.rel (0) target = $region37
  $region36: #{conv_block_apply.1} parent=0 // pred_region
    _
  $region37: #{conv_block_apply.1} parent=0 // pred_fallthru
    _

</llo_original>
